<compile_context>
chip_gen: v7x
topology: tpu7x:2x2x1
jax: 0.10.0
libtpu: 0.0.40
codegen_flags: <defaults>
</compile_context>

<pallas_src>
import functools

import jax
import jax.numpy as jnp
from jax.experimental import pallas as pl
from jax.experimental.pallas import tpu as pltpu


def _round_up(n: int, m: int) -> int:
    return ((n + m - 1) // m) * m


def _fused_mlp_kernel(x_ref, w_ref, b_ref, o_ref, *, row_offsets, row_counts, n_out):
    """One grid step: push `block_b` rows of x through all layers, store (block_b, n_out)."""
    h = x_ref[...]
    n_layers = len(row_offsets)
    for l in range(n_layers):
        off = row_offsets[l]
        k = row_counts[l]
        w = w_ref[off:off + k, :]          # static slice of the resident weight blob
        b = b_ref[l:l + 1, :]              # (1, W) bias row
        h = jnp.dot(h, w, preferred_element_type=jnp.float32) + b
        if l < n_layers - 1:               # hidden layers: Linear + ReLU; last: Linear only
            h = jnp.maximum(h, 0.0)
    # True-width store (single masked vst); padded columns of h are exactly zero anyway.
    o_ref[...] = h[:, :n_out].astype(o_ref.dtype)


def prepare_params(params):
    """ONE-TIME packing of per-layer (w, b) into a single weight blob + bias blob.

    Do this once at init, not per forward call.  Returns (w_blob, b_blob, meta).
    """
    n_inp = params[0][0].shape[0]
    n_out = params[-1][0].shape[1]
    W = max(_round_up(w.shape[1], 128) for w, _ in params)   # uniform padded width

    w_rows, b_rows = [], []
    row_offsets, row_counts = [], []
    off = 0
    for l, (w, b) in enumerate(params):
        k_real, n_real = w.shape
        k_pad = n_inp if l == 0 else W          # rows match previous layer's padded width
        w_p = jnp.zeros((k_pad, W), jnp.float32).at[:k_real, :n_real].set(w)
        b_p = jnp.zeros((1, W), jnp.float32).at[:, :n_real].set(b.reshape(1, -1))
        w_rows.append(w_p)
        b_rows.append(b_p)
        row_offsets.append(off)
        row_counts.append(k_pad)
        off += k_pad

    w_blob = jnp.concatenate(w_rows, axis=0)    # (sum_rows, W)
    b_blob = jnp.concatenate(b_rows, axis=0)    # (L, W)
    meta = dict(
        row_offsets=tuple(row_offsets),
        row_counts=tuple(row_counts),
        n_inp=n_inp,
        n_out=n_out,
        width=W,
    )
    return w_blob, b_blob, meta


def neural_network_forward(x, w_blob, b_blob, meta, *, block_b=256):
    """Mirrors NeuralNetwork.forward: hidden Linear+ReLU layers, then the output Linear."""
    B, n_inp = x.shape
    assert n_inp == meta["n_inp"]
    n_out = meta["n_out"]
    W = meta["width"]

    block_b = min(block_b, B)                   # B=16 -> one grid step
    grid = (pl.cdiv(B, block_b),)

    kernel = functools.partial(
        _fused_mlp_kernel,
        row_offsets=meta["row_offsets"],
        row_counts=meta["row_counts"],
        n_out=n_out,
    )

    flops = sum(2 * B * k * W for k in meta["row_counts"])
    bytes_accessed = (x.size + w_blob.size + b_blob.size + B * n_out) * 4

    return pl.pallas_call(
        kernel,
        out_shape=jax.ShapeDtypeStruct((B, n_out), x.dtype),
        grid=grid,
        in_specs=[
            pl.BlockSpec((block_b, n_inp), lambda i: (i, 0)),   # x: row-tiled
            pl.BlockSpec(w_blob.shape, lambda i: (0, 0)),       # weights: VMEM-resident
            pl.BlockSpec(b_blob.shape, lambda i: (0, 0)),       # biases: VMEM-resident
        ],
        out_specs=pl.BlockSpec((block_b, n_out), lambda i: (i, 0)),
        compiler_params=pltpu.CompilerParams(dimension_semantics=("parallel",)),
        cost_estimate=pl.CostEstimate(
            flops=int(flops),
            transcendentals=0,
            bytes_accessed=int(bytes_accessed),
        ),
    )(x, w_blob, b_blob)


def init_params(key, n_inp_features, n_output_features, layer_sizes):
    """Deterministic init matching nn.Linear's U(-1/sqrt(fan_in), 1/sqrt(fan_in))."""
    sizes = [n_inp_features] + list(layer_sizes)
    params = []
    for i in range(1, len(sizes)):              # hidden layers
        key, kw, kb = jax.random.split(key, 3)
        fan_in, fan_out = sizes[i - 1], sizes[i]
        bound = 1.0 / jnp.sqrt(fan_in)
        w = jax.random.uniform(kw, (fan_in, fan_out), jnp.float32, -bound, bound)
        b = jax.random.uniform(kb, (1, fan_out), jnp.float32, -bound, bound)
        params.append((w, b))
    key, kw, kb = jax.random.split(key, 3)      # output layer
    fan_in = sizes[-1]
    bound = 1.0 / jnp.sqrt(fan_in)
    w = jax.random.uniform(kw, (fan_in, n_output_features), jnp.float32, -bound, bound)
    b = jax.random.uniform(kb, (1, n_output_features), jnp.float32, -bound, bound)
    params.append((w, b))
    return params


if __name__ == "__main__":
    # Small shapes consistent with the module: n_inp=32, layer_sizes=[64, 128], n_out=16.
    B = 16
    N_INP = 32
    LAYER_SIZES = [64, 128]
    N_OUT = 16

    key = jax.random.PRNGKey(0)
    key, kx = jax.random.split(key)
    x = jax.random.normal(kx, (B, N_INP), jnp.float32)

    params = init_params(key, N_INP, N_OUT, LAYER_SIZES)

    # One-time packing (hoisted out of the per-call path).
    w_blob, b_blob, meta = prepare_params(params)
    w_blob, b_blob = jax.block_until_ready((w_blob, b_blob))

    out = neural_network_forward(x, w_blob, b_blob, meta)
    out = jax.block_until_ready(out)

    # Reference check in plain JAX (same math, unpadded params).
    ref = x
    for w, b in params[:-1]:
        ref = jnp.maximum(ref @ w + b, 0.0)
    ref = ref @ params[-1][0] + params[-1][1]

    assert out.shape == (B, N_OUT)
    assert jnp.allclose(out, ref, atol=1e-5, rtol=1e-5)

    print("KERNEL_OK")
</pallas_src>

<mosaic_0001>
module attributes {stable_mosaic.version = 11 : i64} {
  func.func @_fused_mlp_kernel(%arg0: i32, %arg1: memref<16x32xf32, #tpu.memory_space<vmem>>, %arg2: memref<288x128xf32, #tpu.memory_space<vmem>>, %arg3: memref<3x128xf32, #tpu.memory_space<vmem>>, %arg4: memref<16x16xf32, #tpu.memory_space<vmem>>) attributes {dimension_semantics = [#tpu.dimension_semantics<parallel>], iteration_bounds = array<i64: 1>, scalar_prefetch = 0 : i64, scratch_operands = 0 : i64, tpu.core_type = #tpu.core_type<tc>, window_params = [{transform_indices = @transform_0, window_bounds = array<i64: 16, 32>}, {pipeline_mode = #tpu.pipeline_mode<synchronous>, transform_indices = @transform_1, window_bounds = array<i64: 288, 128>}, {pipeline_mode = #tpu.pipeline_mode<synchronous>, transform_indices = @transform_2, window_bounds = array<i64: 3, 128>}, {transform_indices = @transform_3, window_bounds = array<i64: 16, 16>}]} {
    %c0 = arith.constant 0 : index
    %c0_0 = arith.constant 0 : index
    %0 = vector.load %arg1[%c0, %c0_0] : memref<16x32xf32, #tpu.memory_space<vmem>>, vector<16x32xf32>
    %c0_1 = arith.constant 0 : index
    %c0_2 = arith.constant 0 : index
    %1 = vector.load %arg2[%c0_1, %c0_2] : memref<288x128xf32, #tpu.memory_space<vmem>>, vector<32x128xf32>
    %c0_3 = arith.constant 0 : index
    %c0_4 = arith.constant 0 : index
    %2 = vector.load %arg3[%c0_3, %c0_4] : memref<3x128xf32, #tpu.memory_space<vmem>>, vector<1x128xf32>
    %cst = arith.constant dense<0.000000e+00> : vector<16x128xf32>
    %3 = tpu.matmul %0, %1, %cst {dimension_numbers = #tpu.dot_dimension_numbers<[1], [0], [0], [1], [0, 0, 1, 1], [], []>} : vector<16x32xf32>, vector<32x128xf32>, vector<16x128xf32> -> vector<16x128xf32>
    %4 = vector.broadcast %2 : vector<1x128xf32> to vector<16x128xf32>
    %5 = arith.addf %3, %4 : vector<16x128xf32>
    %cst_5 = arith.constant 0.000000e+00 : f32
    %6 = vector.broadcast %cst_5 : f32 to vector<16x128xf32>
    %7 = arith.maximumf %5, %6 : vector<16x128xf32>
    %c32 = arith.constant 32 : index
    %c0_6 = arith.constant 0 : index
    %8 = vector.load %arg2[%c32, %c0_6] : memref<288x128xf32, #tpu.memory_space<vmem>>, vector<128x128xf32>
    %c1 = arith.constant 1 : index
    %c0_7 = arith.constant 0 : index
    %9 = vector.load %arg3[%c1, %c0_7] : memref<3x128xf32, #tpu.memory_space<vmem>>, vector<1x128xf32>
    %cst_8 = arith.constant dense<0.000000e+00> : vector<16x128xf32>
    %10 = tpu.matmul %7, %8, %cst_8 {dimension_numbers = #tpu.dot_dimension_numbers<[1], [0], [0], [1], [0, 0, 1, 1], [], []>} : vector<16x128xf32>, vector<128x128xf32>, vector<16x128xf32> -> vector<16x128xf32>
    %11 = vector.broadcast %9 : vector<1x128xf32> to vector<16x128xf32>
    %12 = arith.addf %10, %11 : vector<16x128xf32>
    %cst_9 = arith.constant 0.000000e+00 : f32
    %13 = vector.broadcast %cst_9 : f32 to vector<16x128xf32>
    %14 = arith.maximumf %12, %13 : vector<16x128xf32>
    %c160 = arith.constant 160 : index
    %c0_10 = arith.constant 0 : index
    %15 = vector.load %arg2[%c160, %c0_10] : memref<288x128xf32, #tpu.memory_space<vmem>>, vector<128x128xf32>
    %c2 = arith.constant 2 : index
    %c0_11 = arith.constant 0 : index
    %16 = vector.load %arg3[%c2, %c0_11] : memref<3x128xf32, #tpu.memory_space<vmem>>, vector<1x128xf32>
    %cst_12 = arith.constant dense<0.000000e+00> : vector<16x128xf32>
    %17 = tpu.matmul %14, %15, %cst_12 {dimension_numbers = #tpu.dot_dimension_numbers<[1], [0], [0], [1], [0, 0, 1, 1], [], []>} : vector<16x128xf32>, vector<128x128xf32>, vector<16x128xf32> -> vector<16x128xf32>
    %18 = vector.broadcast %16 : vector<1x128xf32> to vector<16x128xf32>
    %19 = arith.addf %17, %18 : vector<16x128xf32>
    %20 = vector.extract_strided_slice %19 {offsets = [0, 0], sizes = [16, 16], strides = [1, 1]} : vector<16x128xf32> to vector<16x16xf32>
    %c0_13 = arith.constant 0 : index
    %c0_14 = arith.constant 0 : index
    %21 = vector.load %arg4[%c0_13, %c0_14] : memref<16x16xf32, #tpu.memory_space<vmem>>, vector<16x16xf32>
    tpu.vector_store %arg4[%c0_13, %c0_14], %20 {strides = array<i32>} : memref<16x16xf32, #tpu.memory_space<vmem>>, vector<16x16xf32>,
    return
  }
  func.func @transform_0(%arg0: i32) -> (i32, i32) {
    %c0_i32 = arith.constant 0 : i32
    %c0_i32_0 = arith.constant 0 : i32
    return %arg0, %c0_i32 : i32, i32
  }
  func.func @transform_1(%arg0: i32) -> (i32, i32) {
    %c0_i32 = arith.constant 0 : i32
    %c0_i32_0 = arith.constant 0 : i32
    %c0_i32_1 = arith.constant 0 : i32
    return %c0_i32, %c0_i32_0 : i32, i32
  }
  func.func @transform_2(%arg0: i32) -> (i32, i32) {
    %c0_i32 = arith.constant 0 : i32
    %c0_i32_0 = arith.constant 0 : i32
    %c0_i32_1 = arith.constant 0 : i32
    return %c0_i32, %c0_i32_0 : i32, i32
  }
  func.func @transform_3(%arg0: i32) -> (i32, i32) {
    %c0_i32 = arith.constant 0 : i32
    %c0_i32_0 = arith.constant 0 : i32
    return %arg0, %c0_i32 : i32, i32
  }
}

</mosaic_0001>

<llo_original>
// kernel: tpu_custom_call.1
$region0: #{tpu_custom_call.1}
  #allocation0 [shape = 'u32[]', space=smem, size = 0x4, offset = 0x4, fixed_abs, tag = 'smem constant byte address 0x4 - core index']
  #allocation1 [shape = 'u32[144,128]{1,0:T(1,128)}', space=vmem, size = 0x12000, scoped, tag = 'internal scratch']
  %s0 = inlined_call_operand.hbm [shape: f32[16,32], index: 0, kind: input, shape index: {}]
  %s1 = inlined_call_operand.hbm [shape: f32[288,128], index: 1, kind: input, shape index: {}]
  %s2 = inlined_call_operand.vmem [shape: f32[3,128], index: 2, kind: input, shape index: {}]
  %s3 = inlined_call_operand.hbm [shape: f32[16,16], index: 3, kind: output, shape index: {}]
  %s4 = sld [smem:[#allocation0]]
  $region30: #{tpu_custom_call.1} parent=0
    _
  %s6 = ssub.s32 1, %s4
  %s7 = scalar_select 0, %s6, %s4
  $region1: #{tpu_custom_call.1} parent=0
    #allocation2 [shape = 'u8[8192]{0}', space=vmem, size = 0x2000, scoped, tag = 'input window, operand 0, single buffered']
    #allocation3 [shape = 's32[1]{0}', space=sflag, size = 0x4, scoped, tag = 'scoped memory for tpu_custom_call.1']
    #allocation4 [shape = 's32[1]{0}', space=sflag, size = 0x4, scoped, tag = 'scoped memory for tpu_custom_call.1']
    #allocation5 [shape = 'u8[147456]{0}', space=vmem, size = 0x24000, scoped, tag = 'input window, operand 1, single buffered']
    #allocation6 [shape = 's32[1]{0}', space=sflag, size = 0x4, scoped, tag = 'scoped memory for tpu_custom_call.1']
    #allocation7 [shape = 'u8[8192]{0}', space=vmem, size = 0x2000, scoped, tag = 'output window, operand 0, single buffered']
    %8 = vsyncpa [#allocation3], 0
    %9 = vsyncpa [#allocation6], 0
    %10 = vsyncpa [#allocation4], 0
    // Predicated region
    $region2: #{tpu_custom_call.1} parent=1 // pred_check
      _
    $region3: #{tpu_custom_call.1} parent=1 // pred_check_branch
      %12 = sbr.rel (0) target = $region5
    $region4: #{tpu_custom_call.1} parent=1 // pred_region
      %s14 = ssub.s32 256, 256
      %15 = vsyncadd [#allocation3], %s14
      %s16 = sshll.u32 [#allocation2], 4
      %s17 = int_to_ptr.vmem [resolvable:$true] %s16
      %22 = dma.hbm_to_vmem [thread:$0]  %s0, 256, %s17, [#allocation3], 128, 128, 8
    $region5: #{tpu_custom_call.1} parent=1 // pred_fallthru
      _
    // Predicated region
    $region6: #{tpu_custom_call.1} parent=1 // pred_check
      _
    $region7: #{tpu_custom_call.1} parent=1 // pred_check_branch
      %24 = sbr.rel (0) target = $region9
    $region8: #{tpu_custom_call.1} parent=1 // pred_region
      %s26 = ssub.s32 4608, 4608
      %27 = vsyncadd [#allocation6], %s26
      %s28 = sshll.u32 [#allocation5], 4
      %s29 = int_to_ptr.vmem [resolvable:$true] %s28
      %34 = dma.hbm_to_vmem [thread:$0]  %s1, 4608, %s29, [#allocation6], 128, 128, 8
    $region9: #{tpu_custom_call.1} parent=1 // pred_fallthru
      _
    // Predicated region
    $region10: #{tpu_custom_call.1} parent=1 // pred_check
      _
    $region11: #{tpu_custom_call.1} parent=1 // pred_check_branch
      %36 = sbr.rel (0) target = $region13
    $region12: #{tpu_custom_call.1} parent=1 // pred_region
      _
    $region13: #{tpu_custom_call.1} parent=1 // pred_fallthru
      _
    // Predicated region
    $region14: #{tpu_custom_call.1} parent=1 // pred_check
      _
    $region15: #{tpu_custom_call.1} parent=1 // pred_check_branch
      %38 = sbr.rel (0) target = $region17
    $region16: #{tpu_custom_call.1} parent=1 // pred_region
      %39 = dma.done [#allocation3], 256
    $region17: #{tpu_custom_call.1} parent=1 // pred_fallthru
      _
    // Predicated region
    $region18: #{tpu_custom_call.1} parent=1 // pred_check
      _
    $region19: #{tpu_custom_call.1} parent=1 // pred_check_branch
      %41 = sbr.rel (0) target = $region21
    $region20: #{tpu_custom_call.1} parent=1 // pred_region
      %42 = dma.done [#allocation6], 4608
    $region21: #{tpu_custom_call.1} parent=1 // pred_fallthru
      _
    %v43 = vld [vmem:[#allocation2] sm:$0xff]
    %v44 = vld [vmem:[#allocation2 + $0x8] sm:$0xff]
    %v45 = vld [vmem:[#allocation5] sm:$0xff]
    %v46 = vld [vmem:[#allocation5 + $0x8] sm:$0xff]
    %v47 = vld [vmem:[#allocation5 + $0x10] sm:$0xff]
    %v48 = vld [vmem:[#allocation5 + $0x18] sm:$0xff]
    %v49 = vld [vmem:[%s2] sm:$0x1]
    %v50 = vlaneseq
    %v51 = vshrl.u32 %v50, 7
    %v52 = vsub.s32 0, %v51
    %v53 = vrot.slane %v49, %v52
    %vm54 = vcmask 261120
    %v56 = vsel %vm54, %v43, 0
    %v59 = vsel %vm54, %v44, 0
    %61 = vmatprep.subr.mxu0 0.0
    %62 = vmatpush1.msra.mxu0 %v45
    %63 = vmatprep.subr.mxu0 0.0
    %64 = vmatpush1.msra.mxu0 %v46
    %65 = vmatprep.subr.mxu0 0.0
    %66 = vmatpush1.msra.mxu0 %v47
    %67 = vmatprep.subr.mxu0 0.0
    %68 = vmatpush1.msra.mxu0 %v48
    %69 = vmatprep.subr.mxu0 0.0
    %70 = vmatpush1.msra.mxu0 0.0
    %71 = vmatprep.subr.mxu0 0.0
    %72 = vmatpush1.msra.mxu0 0.0
    %73 = vmatprep.subr.mxu0 0.0
    %74 = vmatpush1.msra.mxu0 0.0
    %75 = vmatprep.subr.mxu0 0.0
    %76 = vmatpush1.msra.mxu0 0.0
    %77 = vmatprep.subr.mxu0 0.0
    %78 = vmatpush1.msra.mxu0 0.0
    %79 = vmatprep.subr.mxu0 0.0
    %80 = vmatpush1.msra.mxu0 0.0
    %81 = vmatprep.subr.mxu0 0.0
    %82 = vmatpush1.msra.mxu0 0.0
    %83 = vmatprep.subr.mxu0 0.0
    %84 = vmatpush1.msra.mxu0 0.0
    %85 = vmatprep.subr.mxu0 0.0
    %86 = vmatpush1.msra.mxu0 0.0
    %87 = vmatprep.subr.mxu0 0.0
    %88 = vmatpush1.msra.mxu0 0.0
    %89 = vmatprep.subr.mxu0 0.0
    %90 = vmatpush1.msra.mxu0 0.0
    %91 = vmatprep.subr.mxu0 0.0
    %92 = vmatpush1.msra.mxu0 0.0
    %93 = vmatprep.subr.mxu0 0.0
    %94 = vmatpush1.msra.mxu0 0.0
    %95 = vmatprep.subr.mxu0 0.0
    %96 = vmatpush1.msra.mxu0 0.0
    %97 = vmatprep.subr.mxu0 0.0
    %98 = vmatpush1.msra.mxu0 0.0
    %99 = vmatprep.subr.mxu0 0.0
    %100 = vmatpush1.msra.mxu0 0.0
    %101 = vmatprep.subr.mxu0 0.0
    %102 = vmatpush1.msra.mxu0 0.0
    %103 = vmatprep.subr.mxu0 0.0
    %104 = vmatpush1.msra.mxu0 0.0
    %105 = vmatprep.subr.mxu0 0.0
    %106 = vmatpush1.msra.mxu0 0.0
    %107 = vmatprep.subr.mxu0 0.0
    %108 = vmatpush1.msra.mxu0 0.0
    %109 = vmatprep.subr.mxu0 0.0
    %110 = vmatpush1.msra.mxu0 0.0
    %111 = vmatprep.subr.mxu0 0.0
    %112 = vmatpush1.msra.mxu0 0.0
    %113 = vmatprep.subr.mxu0 0.0
    %114 = vmatpush1.msra.mxu0 0.0
    %115 = vmatprep.subr.mxu0 0.0
    %116 = vmatpush1.msra.mxu0 0.0
    %117 = vmatprep.subr.mxu0 0.0
    %118 = vmatpush1.msra.mxu0 0.0
    %119 = vmatprep.subr.mxu0 0.0
    %120 = vmatpush1.msra.mxu0 0.0
    %121 = vmatprep.subr.mxu0 0.0
    %122 = vmatpush1.msra.mxu0 0.0
    %123 = vmatprep.subr.mxu0 0.0
    %124 = vmatpush1.msra.mxu0 0.0
    %125 = vmatprep.mubr.f32.mxu0 0.0
    %126 = vmatmul.mubr.f32.gmra.mrb[0].mxu0 %v56
    %v127 = vpop.f32.mrb[0].mxu0
    %v128 = vadd.f32 %v53, %v127
    %v129 = vpop.f32.mrb[0].mxu0
    %130 = vmatprep.mubr.f32.mxu0 0.0
    %131 = vmatmul.mubr.f32.gmra.mrb[0].mxu0 %v59
    %v132 = vpop.f32.mrb[0].mxu0
    %v133 = vadd.f32 %v53, %v132
    %v134 = vpop.f32.mrb[0].mxu0
    %135 = vdwg.mxu0
    %v136 = vmax.f32 %v128, 0.0
    %v137 = vmax.f32 %v133, 0.0
    %v138 = vld [vmem:[#allocation5 + $0x20] sm:$0xff]
    %v139 = vld [vmem:[#allocation5 + $0x28] sm:$0xff]
    %v140 = vld [vmem:[#allocation5 + $0x30] sm:$0xff]
    %v141 = vld [vmem:[#allocation5 + $0x38] sm:$0xff]
    %v142 = vld [vmem:[#allocation5 + $0x40] sm:$0xff]
    %v143 = vld [vmem:[#allocation5 + $0x48] sm:$0xff]
    %v144 = vld [vmem:[#allocation5 + $0x50] sm:$0xff]
    %v145 = vld [vmem:[#allocation5 + $0x58] sm:$0xff]
    %v146 = vld [vmem:[#allocation5 + $0x60] sm:$0xff]
    %v147 = vld [vmem:[#allocation5 + $0x68] sm:$0xff]
    %v148 = vld [vmem:[#allocation5 + $0x70] sm:$0xff]
    %v149 = vld [vmem:[#allocation5 + $0x78] sm:$0xff]
    %v150 = vld [vmem:[#allocation5 + $0x80] sm:$0xff]
    %v151 = vld [vmem:[#allocation5 + $0x88] sm:$0xff]
    %v152 = vld [vmem:[#allocation5 + $0x90] sm:$0xff]
    %v153 = vld [vmem:[#allocation5 + $0x98] sm:$0xff]
    %v154 = vld [vmem:[%s2 + $0x1] sm:$0x1]
    %v155 = vlaneseq
    %v156 = vshrl.u32 %v155, 7
    %v157 = vsub.s32 0, %v156
    %v158 = vrot.slane %v154, %v157
    %159 = vmatprep.subr.mxu0 0.0
    %160 = vmatpush1.msra.mxu0 %v138
    %161 = vmatprep.subr.mxu0 0.0
    %162 = vmatpush1.msra.mxu0 %v139
    %163 = vmatprep.subr.mxu0 0.0
    %164 = vmatpush1.msra.mxu0 %v140
    %165 = vmatprep.subr.mxu0 0.0
    %166 = vmatpush1.msra.mxu0 %v141
    %167 = vmatprep.subr.mxu0 0.0
    %168 = vmatpush1.msra.mxu0 %v142
    %169 = vmatprep.subr.mxu0 0.0
    %170 = vmatpush1.msra.mxu0 %v143
    %171 = vmatprep.subr.mxu0 0.0
    %172 = vmatpush1.msra.mxu0 %v144
    %173 = vmatprep.subr.mxu0 0.0
    %174 = vmatpush1.msra.mxu0 %v145
    %175 = vmatprep.subr.mxu0 0.0
    %176 = vmatpush1.msra.mxu0 %v146
    %177 = vmatprep.subr.mxu0 0.0
    %178 = vmatpush1.msra.mxu0 %v147
    %179 = vmatprep.subr.mxu0 0.0
    %180 = vmatpush1.msra.mxu0 %v148
    %181 = vmatprep.subr.mxu0 0.0
    %182 = vmatpush1.msra.mxu0 %v149
    %183 = vmatprep.subr.mxu0 0.0
    %184 = vmatpush1.msra.mxu0 %v150
    %185 = vmatprep.subr.mxu0 0.0
    %186 = vmatpush1.msra.mxu0 %v151
    %187 = vmatprep.subr.mxu0 0.0
    %188 = vmatpush1.msra.mxu0 %v152
    %189 = vmatprep.subr.mxu0 0.0
    %190 = vmatpush1.msra.mxu0 %v153
    %191 = vmatprep.subr.mxu0 0.0
    %192 = vmatpush1.msra.mxu0 0.0
    %193 = vmatprep.subr.mxu0 0.0
    %194 = vmatpush1.msra.mxu0 0.0
    %195 = vmatprep.subr.mxu0 0.0
    %196 = vmatpush1.msra.mxu0 0.0
    %197 = vmatprep.subr.mxu0 0.0
    %198 = vmatpush1.msra.mxu0 0.0
    %199 = vmatprep.subr.mxu0 0.0
    %200 = vmatpush1.msra.mxu0 0.0
    %201 = vmatprep.subr.mxu0 0.0
    %202 = vmatpush1.msra.mxu0 0.0
    %203 = vmatprep.subr.mxu0 0.0
    %204 = vmatpush1.msra.mxu0 0.0
    %205 = vmatprep.subr.mxu0 0.0
    %206 = vmatpush1.msra.mxu0 0.0
    %207 = vmatprep.subr.mxu0 0.0
    %208 = vmatpush1.msra.mxu0 0.0
    %209 = vmatprep.subr.mxu0 0.0
    %210 = vmatpush1.msra.mxu0 0.0
    %211 = vmatprep.subr.mxu0 0.0
    %212 = vmatpush1.msra.mxu0 0.0
    %213 = vmatprep.subr.mxu0 0.0
    %214 = vmatpush1.msra.mxu0 0.0
    %215 = vmatprep.subr.mxu0 0.0
    %216 = vmatpush1.msra.mxu0 0.0
    %217 = vmatprep.subr.mxu0 0.0
    %218 = vmatpush1.msra.mxu0 0.0
    %219 = vmatprep.subr.mxu0 0.0
    %220 = vmatpush1.msra.mxu0 0.0
    %221 = vmatprep.subr.mxu0 0.0
    %222 = vmatpush1.msra.mxu0 0.0
    %223 = vmatprep.mubr.f32.mxu0 0.0
    %224 = vmatmul.mubr.f32.gmra.mrb[0].mxu0 %v136
    %v225 = vpop.f32.mrb[0].mxu0
    %v226 = vadd.f32 %v158, %v225
    %v227 = vpop.f32.mrb[0].mxu0
    %228 = vmatprep.mubr.f32.mxu0 0.0
    %229 = vmatmul.mubr.f32.gmra.mrb[0].mxu0 %v137
    %v230 = vpop.f32.mrb[0].mxu0
    %v231 = vadd.f32 %v158, %v230
    %v232 = vpop.f32.mrb[0].mxu0
    %233 = vdwg.mxu0
    %v234 = vmax.f32 %v226, 0.0
    %v235 = vmax.f32 %v231, 0.0
    %v236 = vld [vmem:[#allocation5 + $0xa0] sm:$0xff]
    %v237 = vld [vmem:[#allocation5 + $0xa8] sm:$0xff]
    %v238 = vld [vmem:[#allocation5 + $0xb0] sm:$0xff]
    %v239 = vld [vmem:[#allocation5 + $0xb8] sm:$0xff]
    %v240 = vld [vmem:[#allocation5 + $0xc0] sm:$0xff]
    %v241 = vld [vmem:[#allocation5 + $0xc8] sm:$0xff]
    %v242 = vld [vmem:[#allocation5 + $0xd0] sm:$0xff]
    %v243 = vld [vmem:[#allocation5 + $0xd8] sm:$0xff]
    %v244 = vld [vmem:[#allocation5 + $0xe0] sm:$0xff]
    %v245 = vld [vmem:[#allocation5 + $0xe8] sm:$0xff]
    %v246 = vld [vmem:[#allocation5 + $0xf0] sm:$0xff]
    %v247 = vld [vmem:[#allocation5 + $0xf8] sm:$0xff]
    %v248 = vld [vmem:[#allocation5 + $0x100] sm:$0xff]
    %v249 = vld [vmem:[#allocation5 + $0x108] sm:$0xff]
    %v250 = vld [vmem:[#allocation5 + $0x110] sm:$0xff]
    %v251 = vld [vmem:[#allocation5 + $0x118] sm:$0xff]
    %v252 = vld [vmem:[%s2 + $0x2] sm:$0x1]
    %v253 = vlaneseq
    %v254 = vshrl.u32 %v253, 7
    %v255 = vsub.s32 0, %v254
    %v256 = vrot.slane %v252, %v255
    %257 = vmatprep.subr.mxu0 0.0
    %258 = vmatpush1.msra.mxu0 %v236
    %259 = vmatprep.subr.mxu0 0.0
    %260 = vmatpush1.msra.mxu0 %v237
    %261 = vmatprep.subr.mxu0 0.0
    %262 = vmatpush1.msra.mxu0 %v238
    %263 = vmatprep.subr.mxu0 0.0
    %264 = vmatpush1.msra.mxu0 %v239
    %265 = vmatprep.subr.mxu0 0.0
    %266 = vmatpush1.msra.mxu0 %v240
    %267 = vmatprep.subr.mxu0 0.0
    %268 = vmatpush1.msra.mxu0 %v241
    %269 = vmatprep.subr.mxu0 0.0
    %270 = vmatpush1.msra.mxu0 %v242
    %271 = vmatprep.subr.mxu0 0.0
    %272 = vmatpush1.msra.mxu0 %v243
    %273 = vmatprep.subr.mxu0 0.0
    %274 = vmatpush1.msra.mxu0 %v244
    %275 = vmatprep.subr.mxu0 0.0
    %276 = vmatpush1.msra.mxu0 %v245
    %277 = vmatprep.subr.mxu0 0.0
    %278 = vmatpush1.msra.mxu0 %v246
    %279 = vmatprep.subr.mxu0 0.0
    %280 = vmatpush1.msra.mxu0 %v247
    %281 = vmatprep.subr.mxu0 0.0
    %282 = vmatpush1.msra.mxu0 %v248
    %283 = vmatprep.subr.mxu0 0.0
    %284 = vmatpush1.msra.mxu0 %v249
    %285 = vmatprep.subr.mxu0 0.0
    %286 = vmatpush1.msra.mxu0 %v250
    %287 = vmatprep.subr.mxu0 0.0
    %288 = vmatpush1.msra.mxu0 %v251
    %289 = vmatprep.subr.mxu0 0.0
    %290 = vmatpush1.msra.mxu0 0.0
    %291 = vmatprep.subr.mxu0 0.0
    %292 = vmatpush1.msra.mxu0 0.0
    %293 = vmatprep.subr.mxu0 0.0
    %294 = vmatpush1.msra.mxu0 0.0
    %295 = vmatprep.subr.mxu0 0.0
    %296 = vmatpush1.msra.mxu0 0.0
    %297 = vmatprep.subr.mxu0 0.0
    %298 = vmatpush1.msra.mxu0 0.0
    %299 = vmatprep.subr.mxu0 0.0
    %300 = vmatpush1.msra.mxu0 0.0
    %301 = vmatprep.subr.mxu0 0.0
    %302 = vmatpush1.msra.mxu0 0.0
    %303 = vmatprep.subr.mxu0 0.0
    %304 = vmatpush1.msra.mxu0 0.0
    %305 = vmatprep.subr.mxu0 0.0
    %306 = vmatpush1.msra.mxu0 0.0
    %307 = vmatprep.subr.mxu0 0.0
    %308 = vmatpush1.msra.mxu0 0.0
    %309 = vmatprep.subr.mxu0 0.0
    %310 = vmatpush1.msra.mxu0 0.0
    %311 = vmatprep.subr.mxu0 0.0
    %312 = vmatpush1.msra.mxu0 0.0
    %313 = vmatprep.subr.mxu0 0.0
    %314 = vmatpush1.msra.mxu0 0.0
    %315 = vmatprep.subr.mxu0 0.0
    %316 = vmatpush1.msra.mxu0 0.0
    %317 = vmatprep.subr.mxu0 0.0
    %318 = vmatpush1.msra.mxu0 0.0
    %319 = vmatprep.subr.mxu0 0.0
    %320 = vmatpush1.msra.mxu0 0.0
    %321 = vmatprep.mubr.f32.mxu0 0.0
    %322 = vmatmul.mubr.f32.gmra.mrb[0].mxu0 %v234
    %v323 = vpop.f32.mrb[0].mxu0
    %v324 = vadd.f32 %v256, %v323
    %v325 = vpop.f32.mrb[0].mxu0
    %326 = vmatprep.mubr.f32.mxu0 0.0
    %327 = vmatmul.mubr.f32.gmra.mrb[0].mxu0 %v235
    %v328 = vpop.f32.mrb[0].mxu0
    %v329 = vadd.f32 %v256, %v328
    %v330 = vpop.f32.mrb[0].mxu0
    %331 = vdwg.mxu0
    %vm332 = vcmask 130048
    %333 = vst.msk [vmem:[#allocation7] sm:$0xff] %vm332, %v324
    %334 = vst.msk [vmem:[#allocation7 + $0x8] sm:$0xff] %vm332, %v329
    // Predicated region
    $region22: #{tpu_custom_call.1} parent=1 // pred_check
      _
    $region23: #{tpu_custom_call.1} parent=1 // pred_check_branch
      %336 = sbr.rel (0) target = $region25
    $region24: #{tpu_custom_call.1} parent=1 // pred_region
      %s338 = ssub.s32 256, 256
      %339 = vsyncadd [#allocation4], %s338
      %s340 = sshll.u32 [#allocation7], 4
      %s341 = int_to_ptr.vmem [resolvable:$true] %s340
      %346 = dma.vmem_to_hbm [thread:$0]  %s341, 256, %s3, [#allocation4], 128, 128, 8
    $region25: #{tpu_custom_call.1} parent=1 // pred_fallthru
      _
    // Predicated region
    $region26: #{tpu_custom_call.1} parent=1 // pred_check
      _
    $region27: #{tpu_custom_call.1} parent=1 // pred_check_branch
      %348 = sbr.rel (0) target = $region29
    $region28: #{tpu_custom_call.1} parent=1 // pred_region
      %349 = dma.done [#allocation4], 256
    $region29: #{tpu_custom_call.1} parent=1 // pred_fallthru
      _
    %350 = vsyncpa [#allocation3], 1
    %351 = vsyncpa [#allocation6], 1
    %352 = vsyncpa [#allocation4], 1

</llo_original>
